<compile_context>
chip_gen: v7x
topology: tpu7x:2x2x1
jax: 0.10.0
libtpu: 0.0.40
codegen_flags: <defaults>
</compile_context>

<pallas_src>
import functools

import jax
import jax.numpy as jnp
from jax.experimental import pallas as pl
from jax.experimental.pallas import tpu as pltpu


def _round_up(x, m):
    return ((x + m - 1) // m) * m


# ---------------------------------------------------------------------------
# Pass 1: conv as im2col matmul (bf16 MXU, f32 accum) + per-tile BN partials
# ---------------------------------------------------------------------------
def conv_stats_kernel(p_ref, w_ref, conv_ref, stats_ref):
    # p_ref: (TM, K) bf16 patches,  w_ref: (K, Cpad) bf16
    conv = jnp.dot(p_ref[...], w_ref[...], preferred_element_type=jnp.float32)
    conv_ref[...] = conv                                   # (TM, Cpad) f32
    s1 = jnp.sum(conv, axis=0, keepdims=True)              # (1, Cpad)
    s2 = jnp.sum(conv * conv, axis=0, keepdims=True)       # (1, Cpad)
    stats_ref[...] = jnp.concatenate([s1, s2], axis=0)[None, :, :]


# ---------------------------------------------------------------------------
# Pass 2: folded BN affine + ReLU + MaxPool (lane-dense 128-channel slabs)
# conv_ref block: (1, TPo*ps, Pw, ps*Cpad) where lane group j holds width offset j
# ---------------------------------------------------------------------------
def bn_relu_pool_kernel(conv_ref, scale_ref, shift_ref, out_ref, *, pk, ps, cpad):
    _, rh, pw, lanes = conv_ref.shape          # rh = TPo*ps, lanes = ps*cpad
    tpo = rh // ps
    s = scale_ref[...].reshape(1, 1, 1, lanes)
    t = shift_ref[...].reshape(1, 1, 1, lanes)
    z = jnp.maximum(conv_ref[...] * s + t, 0.0)            # affine + ReLU
    # width pooling: the pk window columns live in the first pk lane groups
    wp = z[..., 0:cpad]
    for j in range(1, pk):
        wp = jnp.maximum(wp, z[..., j * cpad:(j + 1) * cpad])   # (1, rh, pw, cpad)
    # height pooling: rows grouped as (tpo, ps); reduce the first pk offsets
    hp = wp.reshape(tpo, ps, pw, cpad)
    red = hp[:, 0]
    for di in range(1, pk):
        red = jnp.maximum(red, hp[:, di])                       # (tpo, pw, cpad)
    out_ref[...] = red.reshape(1, tpo, pw, cpad)


# ---------------------------------------------------------------------------
# Wrapper (layout transforms / im2col / stat folding are plain-JAX glue)
# ---------------------------------------------------------------------------
def conv_bn_layer(x_nchw, w, b, gamma, beta, *, stride, padding,
                  pool_kernel, pool_stride, pool_padding, eps=1e-5):
    # The conv bias is cancelled exactly by train-mode BN mean subtraction, so it
    # is dropped from the compute path (zero VPU/DMA cost, bit-identical math).
    del b
    N, Cin, H, W = x_nchw.shape
    Cout, _, kh, kw = w.shape
    pk, ps, pp = pool_kernel, pool_stride, pool_padding
    if pk > ps:
        # TODO(synk): overlapping pool windows (pool_kernel > pool_stride) need a
        # halo-aware block layout; not implemented in the fused epilogue.
        raise NotImplementedError("fused maxpool requires pool_kernel <= pool_stride")

    # --- im2col (glue) ---
    # TODO(synk): the kh*kw im2col expansion is still materialized by XLA; an
    # in-kernel (ki,kj) accumulation over halo'd input tiles would keep HBM read
    # traffic at 1x input instead of kh*kw x.
    x = jnp.transpose(x_nchw, (0, 2, 3, 1))                               # NHWC
    x_pad = jnp.pad(x, ((0, 0), (padding, padding), (padding, padding), (0, 0)))
    Ho = (H + 2 * padding - kh) // stride + 1
    Wo = (W + 2 * padding - kw) // stride + 1
    cols = []
    for ki in range(kh):
        for kj in range(kw):
            cols.append(
                x_pad[:, ki:ki + (Ho - 1) * stride + 1:stride,
                         kj:kj + (Wo - 1) * stride + 1:stride, :])
    K = kh * kw * Cin
    M = N * Ho * Wo
    patches = jnp.concatenate(cols, axis=-1).reshape(M, K).astype(jnp.bfloat16)

    # Pad channels to a full 128-lane slab -> unmasked, lane-dense stores.
    Cpad = _round_up(Cout, 128)
    w_mat = jnp.transpose(w, (2, 3, 1, 0)).reshape(K, Cout)
    w_mat = jnp.pad(w_mat, ((0, 0), (0, Cpad - Cout))).astype(jnp.bfloat16)
    gamma_p = jnp.pad(gamma.astype(jnp.float32), (0, Cpad - Cout))
    beta_p = jnp.pad(beta.astype(jnp.float32), (0, Cpad - Cout))

    # --- pass 1: M-tiled matmul + per-tile sum / sum-of-squares ---
    TM = 256
    Mp = _round_up(M, TM)
    if Mp > M:
        patches = jnp.pad(patches, ((0, Mp - M), (0, 0)))   # zero rows: no effect on stats
    n_tiles = Mp // TM

    cost1 = pl.CostEstimate(
        flops=2 * Mp * K * Cpad, transcendentals=0,
        bytes_accessed=Mp * K * 2 + K * Cpad * 2 + Mp * Cpad * 4 + n_tiles * 2 * Cpad * 4)
    conv_out, stats = pl.pallas_call(
        conv_stats_kernel,
        out_shape=(jax.ShapeDtypeStruct((Mp, Cpad), jnp.float32),
                   jax.ShapeDtypeStruct((n_tiles, 2, Cpad), jnp.float32)),
        grid=(n_tiles,),
        in_specs=[pl.BlockSpec((TM, K), lambda i: (i, 0)),
                  pl.BlockSpec((K, Cpad), lambda i: (0, 0))],
        out_specs=(pl.BlockSpec((TM, Cpad), lambda i: (i, 0)),
                   pl.BlockSpec((1, 2, Cpad), lambda i: (i, 0, 0))),
        compiler_params=pltpu.CompilerParams(
            dimension_semantics=("parallel",),
            vmem_limit_bytes=32 * 1024 * 1024),
        cost_estimate=cost1,
    )(patches, w_mat)

    # --- fold BN(batch stats) + affine into per-channel scale/shift (tiny glue) ---
    sums = jnp.sum(stats[:, 0, :], axis=0)
    sqs = jnp.sum(stats[:, 1, :], axis=0)
    mean = sums / M
    var = jnp.maximum(sqs / M - mean * mean, 0.0)
    scale = gamma_p * jax.lax.rsqrt(var + eps)              # (Cpad,)
    shift = beta_p - mean * scale

    # --- pass 2 input layout: (N, Po*ps, Pw, ps*Cpad); lane group j = width offset j
    Po = (Ho + 2 * pp - pk) // ps + 1
    Pw = (Wo + 2 * pp - pk) // ps + 1
    y4 = conv_out[:M].reshape(N, Ho, Wo, Cpad)
    if pp > 0:
        # Pad value maps to -1 after the affine -> 0 after ReLU, so it never wins
        # the max (equivalent to PyTorch's -inf pool padding after ReLU).
        safe = jnp.where(scale != 0.0,
                         (-1.0 - shift) / jnp.where(scale != 0.0, scale, 1.0), 0.0)
        hpadb = jnp.broadcast_to(safe, (N, pp, Wo, Cpad)).astype(jnp.float32)
        y4 = jnp.concatenate([hpadb, y4, hpadb], axis=1)
        wpadb = jnp.broadcast_to(safe, (N, Ho + 2 * pp, pp, Cpad)).astype(jnp.float32)
        y4 = jnp.concatenate([wpadb, y4, wpadb], axis=2)
    Hq, Wq = Po * ps, Pw * ps                               # extent the blocks cover
    Hh, Wh = y4.shape[1], y4.shape[2]
    if Hh > Hq:
        y4 = y4[:, :Hq]
    elif Hh < Hq:
        y4 = jnp.pad(y4, ((0, 0), (0, Hq - Hh), (0, 0), (0, 0)))   # never read
    if Wh > Wq:
        y4 = y4[:, :, :Wq]
    elif Wh < Wq:
        y4 = jnp.pad(y4, ((0, 0), (0, 0), (0, Wq - Wh), (0, 0)))   # never read
    y_g = y4.reshape(N, Hq, Pw, ps * Cpad)

    scale_t = jnp.tile(scale, ps)[None, :]                  # (1, ps*Cpad)
    shift_t = jnp.tile(shift, ps)[None, :]

    # Pooled-row tile: biggest divisor of Po whose input block stays <= 2 MiB.
    tpo = 1
    for cand in range(1, Po + 1):
        if Po % cand == 0 and cand * ps * Pw * ps * Cpad * 4 <= 2 * 1024 * 1024:
            tpo = cand
    n_po_tiles = Po // tpo

    cost2 = pl.CostEstimate(
        flops=N * Hq * Pw * ps * Cpad * 3 + N * Po * Pw * Cpad * max(pk * pk - 1, 0),
        transcendentals=0,
        bytes_accessed=N * Hq * Pw * ps * Cpad * 4 + N * Po * Pw * Cpad * 4
                       + 2 * ps * Cpad * 4)
    pooled = pl.pallas_call(
        functools.partial(bn_relu_pool_kernel, pk=pk, ps=ps, cpad=Cpad),
        out_shape=jax.ShapeDtypeStruct((N, Po, Pw, Cpad), jnp.float32),
        grid=(N, n_po_tiles),
        in_specs=[pl.BlockSpec((1, tpo * ps, Pw, ps * Cpad), lambda n, t: (n, t, 0, 0)),
                  pl.BlockSpec((1, ps * Cpad), lambda n, t: (0, 0)),
                  pl.BlockSpec((1, ps * Cpad), lambda n, t: (0, 0))],
        out_specs=pl.BlockSpec((1, tpo, Pw, Cpad), lambda n, t: (n, t, 0, 0)),
        compiler_params=pltpu.CompilerParams(
            dimension_semantics=("parallel", "parallel"),
            vmem_limit_bytes=32 * 1024 * 1024),
        cost_estimate=cost2,
    )(y_g, scale_t, shift_t)

    out = jnp.transpose(pooled[..., :Cout], (0, 3, 1, 2))   # back to NCHW
    return out


# ---------------------------------------------------------------------------
# Pure-JAX reference (mirrors PyTorch training-mode forward)
# ---------------------------------------------------------------------------
def reference(x, w, b, gamma, beta, *, stride, padding,
              pool_kernel, pool_stride, pool_padding, eps=1e-5):
    conv = jax.lax.conv_general_dilated(
        x, w, window_strides=(stride, stride),
        padding=[(padding, padding), (padding, padding)],
        dimension_numbers=("NCHW", "OIHW", "NCHW"))
    conv = conv + b[None, :, None, None]
    mean = conv.mean(axis=(0, 2, 3), keepdims=True)
    var = ((conv - mean) ** 2).mean(axis=(0, 2, 3), keepdims=True)
    y = (conv - mean) * jax.lax.rsqrt(var + eps)
    y = y * gamma[None, :, None, None] + beta[None, :, None, None]
    y = jnp.maximum(y, 0.0)
    y = jax.lax.reduce_window(
        y, -jnp.inf, jax.lax.max,
        window_dimensions=(1, 1, pool_kernel, pool_kernel),
        window_strides=(1, 1, pool_stride, pool_stride),
        padding=((0, 0), (0, 0),
                 (pool_padding, pool_padding), (pool_padding, pool_padding)))
    return y


if __name__ == "__main__":
    # ConvBNLayer(input_size=4, output_size=8, kernel=3, stride=1, padding=1,
    #             pool_kernel=2, pool_stride=2, pool_padding=0)
    Cin, Cout, ksz = 4, 8, 3
    stride, padding = 1, 1
    pk, ps, pp = 2, 2, 0
    N, H, W = 2, 16, 16

    key = jax.random.PRNGKey(0)
    kx, kw_, kb, kg, kbe = jax.random.split(key, 5)
    x = jax.random.normal(kx, (N, Cin, H, W), dtype=jnp.float32)

    fan_in = Cin * ksz * ksz
    bound = 1.0 / (fan_in ** 0.5)
    w = jax.random.uniform(kw_, (Cout, Cin, ksz, ksz), jnp.float32, -bound, bound)
    b = jax.random.uniform(kb, (Cout,), jnp.float32, -bound, bound)
    gamma = 1.0 + 0.1 * jax.random.normal(kg, (Cout,), jnp.float32)
    beta = 0.1 * jax.random.normal(kbe, (Cout,), jnp.float32)
    # TODO(synk): running_mean/running_var updates (training-mode side effect of
    # BatchNorm2d) are not modeled; they do not affect the forward output.

    layer = jax.jit(functools.partial(
        conv_bn_layer, stride=stride, padding=padding,
        pool_kernel=pk, pool_stride=ps, pool_padding=pp))
    out = jax.block_until_ready(layer(x, w, b, gamma, beta))

    ref = jax.block_until_ready(reference(
        x, w, b, gamma, beta, stride=stride, padding=padding,
        pool_kernel=pk, pool_stride=ps, pool_padding=pp))

    Po = (H + 2 * pp - pk) // ps + 1
    Pw = (W + 2 * pp - pk) // ps + 1
    assert out.shape == (N, Cout, Po, Pw), out.shape
    max_err = float(jnp.max(jnp.abs(out - ref)))
    # bf16 MXU pass vs. f32-accumulated reference: allow ~1e-2 (K=36 contraction).
    assert jnp.allclose(out, ref, atol=1e-2, rtol=1e-2), max_err
    print("KERNEL_OK")
</pallas_src>

<mosaic_0001>
module attributes {stable_mosaic.version = 11 : i64} {
  func.func @conv_stats_kernel(%arg0: i32, %arg1: memref<256x36xbf16, #tpu.memory_space<vmem>>, %arg2: memref<36x128xbf16, #tpu.memory_space<vmem>>, %arg3: memref<256x128xf32, #tpu.memory_space<vmem>>, %arg4: memref<1x2x128xf32, #tpu.memory_space<vmem>>) attributes {dimension_semantics = [#tpu.dimension_semantics<parallel>], iteration_bounds = array<i64: 2>, scalar_prefetch = 0 : i64, scratch_operands = 0 : i64, tpu.core_type = #tpu.core_type<tc>, window_params = [{transform_indices = @transform_0, window_bounds = array<i64: 256, 36>}, {pipeline_mode = #tpu.pipeline_mode<synchronous>, transform_indices = @transform_1, window_bounds = array<i64: 36, 128>}, {transform_indices = @transform_2, window_bounds = array<i64: 256, 128>}, {transform_indices = @transform_3, window_bounds = array<i64: 1, 2, 128>}]} {
    %c0 = arith.constant 0 : index
    %c0_0 = arith.constant 0 : index
    %0 = vector.load %arg1[%c0, %c0_0] : memref<256x36xbf16, #tpu.memory_space<vmem>>, vector<256x36xbf16>
    %c0_1 = arith.constant 0 : index
    %c0_2 = arith.constant 0 : index
    %1 = vector.load %arg2[%c0_1, %c0_2] : memref<36x128xbf16, #tpu.memory_space<vmem>>, vector<36x128xbf16>
    %cst = arith.constant dense<0.000000e+00> : vector<256x128xf32>
    %2 = tpu.matmul %0, %1, %cst {dimension_numbers = #tpu.dot_dimension_numbers<[1], [0], [0], [1], [0, 0, 1, 1], [], []>} : vector<256x36xbf16>, vector<36x128xbf16>, vector<256x128xf32> -> vector<256x128xf32>
    %c0_3 = arith.constant 0 : index
    %c0_4 = arith.constant 0 : index
    %3 = vector.load %arg3[%c0_3, %c0_4] : memref<256x128xf32, #tpu.memory_space<vmem>>, vector<256x128xf32>
    tpu.vector_store %arg3[%c0_3, %c0_4], %2 {strides = array<i32>} : memref<256x128xf32, #tpu.memory_space<vmem>>, vector<256x128xf32>,
    %cst_5 = arith.constant dense<0.000000e+00> : vector<128xf32>
    %4 = vector.multi_reduction <add>, %2, %cst_5 [0] : vector<256x128xf32> to vector<128xf32>
    %5 = vector.shape_cast %4 : vector<128xf32> to vector<1x128xf32>
    %6 = arith.mulf %2, %2 : vector<256x128xf32>
    %cst_6 = arith.constant dense<0.000000e+00> : vector<128xf32>
    %7 = vector.multi_reduction <add>, %6, %cst_6 [0] : vector<256x128xf32> to vector<128xf32>
    %8 = vector.shape_cast %7 : vector<128xf32> to vector<1x128xf32>
    %9 = tpu.concatenate %5, %8 in 0 : vector<1x128xf32>, vector<1x128xf32> -> vector<2x128xf32>
    %10 = vector.shape_cast %9 : vector<2x128xf32> to vector<1x2x128xf32>
    %c0_7 = arith.constant 0 : index
    %c0_8 = arith.constant 0 : index
    %c0_9 = arith.constant 0 : index
    %11 = vector.load %arg4[%c0_7, %c0_8, %c0_9] : memref<1x2x128xf32, #tpu.memory_space<vmem>>, vector<1x2x128xf32>
    tpu.vector_store %arg4[%c0_7, %c0_8, %c0_9], %10 {strides = array<i32>} : memref<1x2x128xf32, #tpu.memory_space<vmem>>, vector<1x2x128xf32>,
    return
  }
  func.func @transform_0(%arg0: i32) -> (i32, i32) {
    %c0_i32 = arith.constant 0 : i32
    %c0_i32_0 = arith.constant 0 : i32
    return %arg0, %c0_i32 : i32, i32
  }
  func.func @transform_1(%arg0: i32) -> (i32, i32) {
    %c0_i32 = arith.constant 0 : i32
    %c0_i32_0 = arith.constant 0 : i32
    %c0_i32_1 = arith.constant 0 : i32
    return %c0_i32, %c0_i32_0 : i32, i32
  }
  func.func @transform_2(%arg0: i32) -> (i32, i32) {
    %c0_i32 = arith.constant 0 : i32
    %c0_i32_0 = arith.constant 0 : i32
    return %arg0, %c0_i32 : i32, i32
  }
  func.func @transform_3(%arg0: i32) -> (i32, i32, i32) {
    %c0_i32 = arith.constant 0 : i32
    %c0_i32_0 = arith.constant 0 : i32
    %c0_i32_1 = arith.constant 0 : i32
    return %arg0, %c0_i32, %c0_i32_0 : i32, i32, i32
  }
}

module attributes {stable_mosaic.version = 11 : i64} {
  func.func @bn_relu_pool_kernel(%arg0: i32, %arg1: i32, %arg2: memref<1x16x8x256xf32, #tpu.memory_space<vmem>>, %arg3: memref<1x256xf32, #tpu.memory_space<vmem>>, %arg4: memref<1x256xf32, #tpu.memory_space<vmem>>, %arg5: memref<1x8x8x128xf32, #tpu.memory_space<vmem>>) attributes {dimension_semantics = [#tpu.dimension_semantics<parallel>, #tpu.dimension_semantics<parallel>], iteration_bounds = array<i64: 2, 1>, scalar_prefetch = 0 : i64, scratch_operands = 0 : i64, tpu.core_type = #tpu.core_type<tc>, window_params = [{transform_indices = @transform_0, window_bounds = array<i64: 1, 16, 8, 256>}, {pipeline_mode = #tpu.pipeline_mode<synchronous>, transform_indices = @transform_1, window_bounds = array<i64: 1, 256>}, {pipeline_mode = #tpu.pipeline_mode<synchronous>, transform_indices = @transform_2, window_bounds = array<i64: 1, 256>}, {transform_indices = @transform_3, window_bounds = array<i64: 1, 8, 8, 128>}]} {
    %c0 = arith.constant 0 : index
    %c0_0 = arith.constant 0 : index
    %0 = vector.load %arg3[%c0, %c0_0] : memref<1x256xf32, #tpu.memory_space<vmem>>, vector<1x256xf32>
    %1 = vector.shape_cast %0 : vector<1x256xf32> to vector<1x1x1x256xf32>
    %c0_1 = arith.constant 0 : index
    %c0_2 = arith.constant 0 : index
    %2 = vector.load %arg4[%c0_1, %c0_2] : memref<1x256xf32, #tpu.memory_space<vmem>>, vector<1x256xf32>
    %3 = vector.shape_cast %2 : vector<1x256xf32> to vector<1x1x1x256xf32>
    %c0_3 = arith.constant 0 : index
    %c0_4 = arith.constant 0 : index
    %c0_5 = arith.constant 0 : index
    %c0_6 = arith.constant 0 : index
    %4 = vector.load %arg2[%c0_3, %c0_4, %c0_5, %c0_6] : memref<1x16x8x256xf32, #tpu.memory_space<vmem>>, vector<1x16x8x256xf32>
    %5 = vector.broadcast %1 : vector<1x1x1x256xf32> to vector<1x16x8x256xf32>
    %6 = arith.mulf %4, %5 : vector<1x16x8x256xf32>
    %7 = vector.broadcast %3 : vector<1x1x1x256xf32> to vector<1x16x8x256xf32>
    %8 = arith.addf %6, %7 : vector<1x16x8x256xf32>
    %cst = arith.constant 0.000000e+00 : f32
    %9 = vector.broadcast %cst : f32 to vector<1x16x8x256xf32>
    %10 = arith.maximumf %8, %9 : vector<1x16x8x256xf32>
    %11 = vector.extract_strided_slice %10 {offsets = [0, 0, 0, 0], sizes = [1, 16, 8, 128], strides = [1, 1, 1, 1]} : vector<1x16x8x256xf32> to vector<1x16x8x128xf32>
    %12 = vector.extract_strided_slice %10 {offsets = [0, 0, 0, 128], sizes = [1, 16, 8, 128], strides = [1, 1, 1, 1]} : vector<1x16x8x256xf32> to vector<1x16x8x128xf32>
    %13 = arith.maximumf %11, %12 : vector<1x16x8x128xf32>
    %14 = vector.shape_cast %13 : vector<1x16x8x128xf32> to vector<8x2x8x128xf32>
    %15 = vector.extract_strided_slice %14 {offsets = [0, 0, 0, 0], sizes = [8, 1, 8, 128], strides = [1, 1, 1, 1]} : vector<8x2x8x128xf32> to vector<8x1x8x128xf32>
    %16 = vector.shape_cast %15 : vector<8x1x8x128xf32> to vector<8x8x128xf32>
    %17 = vector.extract_strided_slice %14 {offsets = [0, 1, 0, 0], sizes = [8, 1, 8, 128], strides = [1, 1, 1, 1]} : vector<8x2x8x128xf32> to vector<8x1x8x128xf32>
    %18 = vector.shape_cast %17 : vector<8x1x8x128xf32> to vector<8x8x128xf32>
    %19 = arith.maximumf %16, %18 : vector<8x8x128xf32>
    %20 = vector.shape_cast %19 : vector<8x8x128xf32> to vector<1x8x8x128xf32>
    %c0_7 = arith.constant 0 : index
    %c0_8 = arith.constant 0 : index
    %c0_9 = arith.constant 0 : index
    %c0_10 = arith.constant 0 : index
    %21 = vector.load %arg5[%c0_7, %c0_8, %c0_9, %c0_10] : memref<1x8x8x128xf32, #tpu.memory_space<vmem>>, vector<1x8x8x128xf32>
    tpu.vector_store %arg5[%c0_7, %c0_8, %c0_9, %c0_10], %20 {strides = array<i32>} : memref<1x8x8x128xf32, #tpu.memory_space<vmem>>, vector<1x8x8x128xf32>,
    return
  }
  func.func @transform_0(%arg0: i32, %arg1: i32) -> (i32, i32, i32, i32) {
    %c0_i32 = arith.constant 0 : i32
    %c0_i32_0 = arith.constant 0 : i32
    %c0_i32_1 = arith.constant 0 : i32
    return %arg0, %arg1, %c0_i32, %c0_i32_0 : i32, i32, i32, i32
  }
  func.func @transform_1(%arg0: i32, %arg1: i32) -> (i32, i32) {
    %c0_i32 = arith.constant 0 : i32
    %c0_i32_0 = arith.constant 0 : i32
    %c0_i32_1 = arith.constant 0 : i32
    return %c0_i32, %c0_i32_0 : i32, i32
  }
  func.func @transform_2(%arg0: i32, %arg1: i32) -> (i32, i32) {
    %c0_i32 = arith.constant 0 : i32
    %c0_i32_0 = arith.constant 0 : i32
    %c0_i32_1 = arith.constant 0 : i32
    return %c0_i32, %c0_i32_0 : i32, i32
  }
  func.func @transform_3(%arg0: i32, %arg1: i32) -> (i32, i32, i32, i32) {
    %c0_i32 = arith.constant 0 : i32
    %c0_i32_0 = arith.constant 0 : i32
    %c0_i32_1 = arith.constant 0 : i32
    return %arg0, %arg1, %c0_i32, %c0_i32_0 : i32, i32, i32, i32
  }
}

</mosaic_0001>

<llo_original>
// kernel: tile.13
$region0: #{tile.13}
  #allocation0 [shape = 's32[1]{0}', space=sflag, size = 0x4, scoped, tag = 'scoped memory for tile.13']
  %s0 = inlined_call_operand.vmem [shape: f32[128], index: 0, kind: input, shape index: {}]
  %s1 = inlined_call_operand.vmem [shape: f32[2,128], index: 1, kind: output, shape index: {}]
  // Predicated region
  $region2: #{tile.13} parent=0 // pred_check
    _
  $region3: #{tile.13} parent=0 // pred_check_branch
    %3 = sbr.rel (0) target = $region5
  $region4: #{tile.13} parent=0 // pred_region
    _
  $region5: #{tile.13} parent=0 // pred_fallthru
    _
  %v4 = vld [vmem:[%s0] ss:$0 sm:$0xff]
  %5 = vst [vmem:[%s1] sm:$0x3] %v4

// kernel: conv_bn_layer.3
$region0: #{conv_bn_layer.3}
  #allocation0 [shape = 'u32[]', space=smem, size = 0x4, offset = 0x4, fixed_abs, tag = 'smem constant byte address 0x4 - core index']
  #allocation1 [shape = 'u32[144,128]{1,0:T(1,128)}', space=vmem, size = 0x12000, scoped, tag = 'internal scratch']
  %s0 = inlined_call_operand.vmem [shape: f32[2,16,8,256], index: 0, kind: input, shape index: {}]
  %s1 = inlined_call_operand.vmem [shape: f32[1,256], index: 1, kind: input, shape index: {}]
  %s2 = inlined_call_operand.vmem [shape: f32[1,256], index: 2, kind: input, shape index: {}]
  %s3 = inlined_call_operand.vmem [shape: f32[2,8,8,128], index: 3, kind: output, shape index: {}]
  %s4 = sld [smem:[#allocation0]]
  $region45: #{conv_bn_layer.3} parent=0
    _
  %s6 = ssub.s32 1, %s4
  %s7 = scalar_select 0, %s6, %s4
  loop: start=0, step=1, limit=4
  $region2: #{conv_bn_layer.3} parent=0 // loop_pre_header
    _
  $region3: #{conv_bn_layer.3} parent=0 // loop_header
    %s9 = sphi 0, %s13
    %p10 = scmp.ge.s32.totalorder %s9, 4
    %s16 = sphi 0, %s28
    %s17 = sphi 0, %s24
    %s18 = sphi 0, %s16
    %s19 = sphi 0, %s17
    %s20 = sphi 0, %s18
    %s21 = sphi 0, %s19
    %s33 = sphi 0, %s35
    %s36 = sphi 0, %s33
    %s37 = sphi 0, %s36
    %s53 = sphi 0, %s37
    %s57 = sphi 0, %s57
    %s59 = sphi 0, %s57
    %s60 = sphi 0, %s59
    %s74 = sphi 0, %s60
    %s78 = sphi 0, %s78
    %s80 = sphi 0, %s78
    %s81 = sphi 0, %s80
    %s95 = sphi 0, %s81
    %s103 = sphi 0, %s105
    %s106 = sphi 0, %s103
    %s107 = sphi 0, %s106
    %s123 = sphi 0, %s107
  $region4: #{conv_bn_layer.3} parent=0 // loop_header_branch
    %12 = sbr.rel (%p10) target = $region8
  $region5: #{conv_bn_layer.3} parent=0 // loop_body
    %s14 = ssub.s32 %s9, 1
    %s15 = ssub.s32 %s9, 2
    %s22 = sadd.s32 1, %s17
    %p23 = scmp.ge.s32.totalorder %s22, 1
    %s24 = scalar_select %p23, 0, %s22
    %s25 = sadd.s32 1, %s16
    %s26 = scalar_select %p23, %s25, %s16
    %p27 = scmp.ge.s32.totalorder %s26, 2
    %s28 = scalar_select %p27, 0, %s26
    %s29 = ssub.s32 %s16, %s28
    %s30 = ssub.s32 %s17, %s24
    %s31 = sor.u32 %s29, %s30
    %p32 = scmp.eq.s32.totalorder %s31, 0
    %s34 = sadd.s32 %s33, 1
    %s35 = scalar_select %p32, %s33, %s34
    %p38 = pneg %p32
    %p39 = scmp.eq.s32.totalorder %s9, 1
    %p40 = por %p38, %p39
    %p41 = scmp.ne.s32.totalorder %s33, %s36
    %p42 = scmp.eq.s32.totalorder %s9, 0
    %p43 = por %p41, %p42
    %p44 = scmp.ne.s32.totalorder %s33, %s36
    %p45 = scmp.eq.s32.totalorder %s14, 1
    %p46 = por %p44, %p45
    %p47 = scmp.ne.s32.totalorder %s36, %s37
    %p48 = scmp.eq.s32.totalorder %s14, 0
    %p49 = por %p47, %p48
    %p50 = scmp.ne.s32.totalorder %s36, %s37
    %p51 = scmp.eq.s32.totalorder %s15, 1
    %p52 = por %p50, %p51
    %p54 = scmp.ne.s32.totalorder %s37, %s53
    %p55 = scmp.eq.s32.totalorder %s15, 0
    %p56 = por %p54, %p55
    %s58 = sadd.s32 %s57, 1
    %p61 = scmp.eq.s32.totalorder %s9, 1
    %p62 = scmp.ne.s32.totalorder %s57, %s59
    %p63 = scmp.eq.s32.totalorder %s9, 0
    %p64 = por %p62, %p63
    %p65 = scmp.ne.s32.totalorder %s57, %s59
    %p66 = scmp.eq.s32.totalorder %s14, 1
    %p67 = por %p65, %p66
    %p68 = scmp.ne.s32.totalorder %s59, %s60
    %p69 = scmp.eq.s32.totalorder %s14, 0
    %p70 = por %p68, %p69
    %p71 = scmp.ne.s32.totalorder %s59, %s60
    %p72 = scmp.eq.s32.totalorder %s15, 1
    %p73 = por %p71, %p72
    %p75 = scmp.ne.s32.totalorder %s60, %s74
    %p76 = scmp.eq.s32.totalorder %s15, 0
    %p77 = por %p75, %p76
    %s79 = sadd.s32 %s78, 1
    %p82 = scmp.eq.s32.totalorder %s9, 1
    %p83 = scmp.ne.s32.totalorder %s78, %s80
    %p84 = scmp.eq.s32.totalorder %s9, 0
    %p85 = por %p83, %p84
    %p86 = scmp.ne.s32.totalorder %s78, %s80
    %p87 = scmp.eq.s32.totalorder %s14, 1
    %p88 = por %p86, %p87
    %p89 = scmp.ne.s32.totalorder %s80, %s81
    %p90 = scmp.eq.s32.totalorder %s14, 0
    %p91 = por %p89, %p90
    %p92 = scmp.ne.s32.totalorder %s80, %s81
    %p93 = scmp.eq.s32.totalorder %s15, 1
    %p94 = por %p92, %p93
    %p96 = scmp.ne.s32.totalorder %s81, %s95
    %p97 = scmp.eq.s32.totalorder %s15, 0
    %p98 = por %p96, %p97
    %s99 = ssub.s32 %s16, %s28
    %s100 = ssub.s32 %s17, %s24
    %s101 = sor.u32 %s99, %s100
    %p102 = scmp.eq.s32.totalorder %s101, 0
    %s104 = sadd.s32 %s103, 1
    %s105 = scalar_select %p102, %s103, %s104
    %p108 = pneg %p102
    %p109 = scmp.eq.s32.totalorder %s9, 1
    %p110 = por %p108, %p109
    %p111 = scmp.ne.s32.totalorder %s103, %s106
    %p112 = scmp.eq.s32.totalorder %s9, 0
    %p113 = por %p111, %p112
    %p114 = scmp.ne.s32.totalorder %s103, %s106
    %p115 = scmp.eq.s32.totalorder %s14, 1
    %p116 = por %p114, %p115
    %p117 = scmp.ne.s32.totalorder %s106, %s107
    %p118 = scmp.eq.s32.totalorder %s14, 0
    %p119 = por %p117, %p118
    %p120 = scmp.ne.s32.totalorder %s106, %s107
    %p121 = scmp.eq.s32.totalorder %s15, 1
    %p122 = por %p120, %p121
    %p124 = scmp.ne.s32.totalorder %s107, %s123
    %p125 = scmp.eq.s32.totalorder %s15, 0
    %p126 = por %p124, %p125
    %p127 = scmp.le.s32.totalorder 1, %s9
    %p128 = scmp.lt.s32.totalorder %s9, 3
    %p129 = pnand %p127, %p128
    %p130 = pneg %p129
    // Predicated region
    $region9: #{conv_bn_layer.3} parent=5 // pred_check
      _
    $region10: #{conv_bn_layer.3} parent=5 // pred_check_branch
      %132 = sbr.rel (%p129) target = $region12
    $region11: #{conv_bn_layer.3} parent=5 // pred_region
      %s133 = ssub.s32 %s9, 1
      // Predicated region
      $region13: #{conv_bn_layer.3} parent=11 // pred_check
        %p134 = pneg %p70
      $region14: #{conv_bn_layer.3} parent=11 // pred_check_branch
        %136 = sbr.rel (%p134) target = $region16
      $region15: #{conv_bn_layer.3} parent=11 // pred_region
        _
      $region16: #{conv_bn_layer.3} parent=11 // pred_fallthru
        _
      // Predicated region
      $region17: #{conv_bn_layer.3} parent=11 // pred_check
        %p137 = pneg %p91
      $region18: #{conv_bn_layer.3} parent=11 // pred_check_branch
        %139 = sbr.rel (%p137) target = $region20
      $region19: #{conv_bn_layer.3} parent=11 // pred_region
        _
      $region20: #{conv_bn_layer.3} parent=11 // pred_fallthru
        _
    $region12: #{conv_bn_layer.3} parent=5 // pred_fallthru
      _
    %p140 = scmp.lt.s32.totalorder %s9, 2
    // Predicated region
    $region21: #{conv_bn_layer.3} parent=5 // pred_check
      %p141 = pneg %p140
    $region22: #{conv_bn_layer.3} parent=5 // pred_check_branch
      %143 = sbr.rel (%p141) target = $region24
    $region23: #{conv_bn_layer.3} parent=5 // pred_region
      // Predicated region
      $region25: #{conv_bn_layer.3} parent=23 // pred_check
        %p144 = pneg %p43
      $region26: #{conv_bn_layer.3} parent=23 // pred_check_branch
        %146 = sbr.rel (%p144) target = $region28
      $region27: #{conv_bn_layer.3} parent=23 // pred_region
        %s147 = smul.u32 16, %s17
        %p148 = scmp.lt.s32.totalorder %s16, 1
        %s149 = scalar_select %p148, %s16, 1
        %p150 = scmp.lt.s32.totalorder %s147, 15
        %s151 = scalar_select %p150, %s147, 15
        %s152 = smul.addr %s151, 2
        %s153 = smul.addr %s149, 32
        %s154 = sadd.s32 %s152, %s153
        %s155 = smul.addr %s154, 8
        %s156 = scalar_lea.vmem %s0, %s155
        %s157 = smul.u32 16, %s17
      $region28: #{conv_bn_layer.3} parent=23 // pred_fallthru
        _
    $region24: #{conv_bn_layer.3} parent=5 // pred_fallthru
      _
    %p158 = scmp.le.s32.totalorder 1, %s9
    %p159 = scmp.lt.s32.totalorder %s9, 3
    %p160 = pnand %p158, %p159
    %p161 = pneg %p160
    // Predicated region
    $region29: #{conv_bn_layer.3} parent=5 // pred_check
      _
    $region30: #{conv_bn_layer.3} parent=5 // pred_check_branch
      %163 = sbr.rel (%p160) target = $region32
    $region31: #{conv_bn_layer.3} parent=5 // pred_region
      %s164 = ssub.s32 %s9, 1
      %s165 = smul.u32 16, %s19
      %p166 = scmp.lt.s32.totalorder %s18, 1
      %s167 = scalar_select %p166, %s18, 1
      %p168 = scmp.lt.s32.totalorder %s165, 15
      %s169 = scalar_select %p168, %s165, 15
      %s170 = smul.addr %s169, 2
      %s171 = smul.addr %s167, 32
      %s172 = sadd.s32 %s170, %s171
      %s173 = smul.addr %s172, 8
      %s174 = scalar_lea.vmem %s0, %s173
      %p175 = pneg %p49
      %p176 = pneg %p46
      %p177 = pneg %p70
      %p178 = pneg %p67
      %p179 = pneg %p91
      %p180 = pneg %p88
      %p181 = pneg %p119
      %p182 = pneg %p116
      %s183 = smul.u32 8, %s19
      %p184 = scmp.lt.s32.totalorder %s18, 1
      %s185 = scalar_select %p184, %s18, 1
      %p186 = scmp.lt.s32.totalorder %s183, 7
      %s187 = scalar_select %p186, %s183, 7
      %s188 = smul.addr %s185, 8
      %s189 = sadd.s32 %s187, %s188
      %s190 = smul.addr %s189, 8
      %s191 = scalar_lea.vmem %s3, %s190
      %s192 = smul.u32 16, %s19
      %p193 = scmp.lt.s32.totalorder %s18, 1
      %s194 = scalar_select %p193, %s18, 1
      %p195 = scmp.lt.s32.totalorder %s192, 15
      %s196 = scalar_select %p195, %s192, 15
      %s197 = smul.addr %s196, 2
      %s198 = smul.addr %s194, 32
      %s199 = sadd.s32 %s197, %s198
      %s200 = smul.addr %s199, 8
      %s201 = scalar_lea.vmem %s0, %s200
      %s202 = smul.u32 16, %s19
      %s203 = smul.u32 8, %s19
      %p204 = scmp.lt.s32.totalorder %s18, 1
      %s205 = scalar_select %p204, %s18, 1
      %p206 = scmp.lt.s32.totalorder %s203, 7
      %s207 = scalar_select %p206, %s203, 7
      %s208 = smul.addr %s205, 8
      %s209 = sadd.s32 %s207, %s208
      %s210 = smul.addr %s209, 8
      %s211 = scalar_lea.vmem %s3, %s210
      %s212 = smul.u32 8, %s19
      %v213 = vld [vmem:[%s1] sm:$0x3]
      %v214 = vld [vmem:[%s2] sm:$0x3]
      %v215 = vld [vmem:[%s201] sm:$0xff]
      %v216 = vld [vmem:[%s201 + $0x8] sm:$0xff]
      %v217 = vld [vmem:[%s201 + $0x10] sm:$0xff]
      %v218 = vld [vmem:[%s201 + $0x18] sm:$0xff]
      %v219 = vld [vmem:[%s201 + $0x20] sm:$0xff]
      %v220 = vld [vmem:[%s201 + $0x28] sm:$0xff]
      %v221 = vld [vmem:[%s201 + $0x30] sm:$0xff]
      %v222 = vld [vmem:[%s201 + $0x38] sm:$0xff]
      %v223 = vld [vmem:[%s201 + $0x40] sm:$0xff]
      %v224 = vld [vmem:[%s201 + $0x48] sm:$0xff]
      %v225 = vld [vmem:[%s201 + $0x50] sm:$0xff]
      %v226 = vld [vmem:[%s201 + $0x58] sm:$0xff]
      %v227 = vld [vmem:[%s201 + $0x60] sm:$0xff]
      %v228 = vld [vmem:[%s201 + $0x68] sm:$0xff]
      %v229 = vld [vmem:[%s201 + $0x70] sm:$0xff]
      %v230 = vld [vmem:[%s201 + $0x78] sm:$0xff]
      %v231 = vld [vmem:[%s201 + $0x80] sm:$0xff]
      %v232 = vld [vmem:[%s201 + $0x88] sm:$0xff]
      %v233 = vld [vmem:[%s201 + $0x90] sm:$0xff]
      %v234 = vld [vmem:[%s201 + $0x98] sm:$0xff]
      %v235 = vld [vmem:[%s201 + $0xa0] sm:$0xff]
      %v236 = vld [vmem:[%s201 + $0xa8] sm:$0xff]
      %v237 = vld [vmem:[%s201 + $0xb0] sm:$0xff]
      %v238 = vld [vmem:[%s201 + $0xb8] sm:$0xff]
      %v239 = vld [vmem:[%s201 + $0xc0] sm:$0xff]
      %v240 = vld [vmem:[%s201 + $0xc8] sm:$0xff]
      %v241 = vld [vmem:[%s201 + $0xd0] sm:$0xff]
      %v242 = vld [vmem:[%s201 + $0xd8] sm:$0xff]
      %v243 = vld [vmem:[%s201 + $0xe0] sm:$0xff]
      %v244 = vld [vmem:[%s201 + $0xe8] sm:$0xff]
      %v245 = vld [vmem:[%s201 + $0xf0] sm:$0xff]
      %v246 = vld [vmem:[%s201 + $0xf8] sm:$0xff]
      %v248 = vlaneseq
      %v249 = vshrl.u32 %v248, 7
      %v250 = vsub.s32 0, %v249
      %v251 = vrot.slane %v213, %v250
      %v252 = vlaneseq
      %v253 = vshrl.u32 %v252, 7
      %v254 = vsub.s32 1, %v253
      %v255 = vrot.slane %v213, %v254
      %v258 = vmul.f32 %v215, %v251
      %v259 = vmul.f32 %v216, %v255
      %v260 = vmul.f32 %v217, %v251
      %v261 = vmul.f32 %v218, %v255
      %v262 = vmul.f32 %v219, %v251
      %v263 = vmul.f32 %v220, %v255
      %v264 = vmul.f32 %v221, %v251
      %v265 = vmul.f32 %v222, %v255
      %v266 = vmul.f32 %v223, %v251
      %v267 = vmul.f32 %v224, %v255
      %v268 = vmul.f32 %v225, %v251
      %v269 = vmul.f32 %v226, %v255
      %v270 = vmul.f32 %v227, %v251
      %v271 = vmul.f32 %v228, %v255
      %v272 = vmul.f32 %v229, %v251
      %v273 = vmul.f32 %v230, %v255
      %v274 = vmul.f32 %v231, %v251
      %v275 = vmul.f32 %v232, %v255
      %v276 = vmul.f32 %v233, %v251
      %v277 = vmul.f32 %v234, %v255
      %v278 = vmul.f32 %v235, %v251
      %v279 = vmul.f32 %v236, %v255
      %v280 = vmul.f32 %v237, %v251
      %v281 = vmul.f32 %v238, %v255
      %v282 = vmul.f32 %v239, %v251
      %v283 = vmul.f32 %v240, %v255
      %v284 = vmul.f32 %v241, %v251
      %v285 = vmul.f32 %v242, %v255
      %v286 = vmul.f32 %v243, %v251
      %v287 = vmul.f32 %v244, %v255
      %v288 = vmul.f32 %v245, %v251
      %v289 = vmul.f32 %v246, %v255
      %v291 = vlaneseq
      %v292 = vshrl.u32 %v291, 7
      %v293 = vsub.s32 0, %v292
      %v294 = vrot.slane %v214, %v293
      %v295 = vlaneseq
      %v296 = vshrl.u32 %v295, 7
      %v297 = vsub.s32 1, %v296
      %v298 = vrot.slane %v214, %v297
      %v301 = vadd.f32 %v258, %v294
      %v302 = vadd.f32 %v259, %v298
      %v303 = vadd.f32 %v260, %v294
      %v304 = vadd.f32 %v261, %v298
      %v305 = vadd.f32 %v262, %v294
      %v306 = vadd.f32 %v263, %v298
      %v307 = vadd.f32 %v264, %v294
      %v308 = vadd.f32 %v265, %v298
      %v309 = vadd.f32 %v266, %v294
      %v310 = vadd.f32 %v267, %v298
      %v311 = vadd.f32 %v268, %v294
      %v312 = vadd.f32 %v269, %v298
      %v313 = vadd.f32 %v270, %v294
      %v314 = vadd.f32 %v271, %v298
      %v315 = vadd.f32 %v272, %v294
      %v316 = vadd.f32 %v273, %v298
      %v317 = vadd.f32 %v274, %v294
      %v318 = vadd.f32 %v275, %v298
      %v319 = vadd.f32 %v276, %v294
      %v320 = vadd.f32 %v277, %v298
      %v321 = vadd.f32 %v278, %v294
      %v322 = vadd.f32 %v279, %v298
      %v323 = vadd.f32 %v280, %v294
      %v324 = vadd.f32 %v281, %v298
      %v325 = vadd.f32 %v282, %v294
      %v326 = vadd.f32 %v283, %v298
      %v327 = vadd.f32 %v284, %v294
      %v328 = vadd.f32 %v285, %v298
      %v329 = vadd.f32 %v286, %v294
      %v330 = vadd.f32 %v287, %v298
      %v331 = vadd.f32 %v288, %v294
      %v332 = vadd.f32 %v289, %v298
      %v333 = vmax.f32 %v301, 0.0
      %v334 = vmax.f32 %v302, 0.0
      %v335 = vmax.f32 %v303, 0.0
      %v336 = vmax.f32 %v304, 0.0
      %v337 = vmax.f32 %v305, 0.0
      %v338 = vmax.f32 %v306, 0.0
      %v339 = vmax.f32 %v307, 0.0
      %v340 = vmax.f32 %v308, 0.0
      %v341 = vmax.f32 %v309, 0.0
      %v342 = vmax.f32 %v310, 0.0
      %v343 = vmax.f32 %v311, 0.0
      %v344 = vmax.f32 %v312, 0.0
      %v345 = vmax.f32 %v313, 0.0
      %v346 = vmax.f32 %v314, 0.0
      %v347 = vmax.f32 %v315, 0.0
      %v348 = vmax.f32 %v316, 0.0
      %v349 = vmax.f32 %v317, 0.0
      %v350 = vmax.f32 %v318, 0.0
      %v351 = vmax.f32 %v319, 0.0
      %v352 = vmax.f32 %v320, 0.0
      %v353 = vmax.f32 %v321, 0.0
      %v354 = vmax.f32 %v322, 0.0
      %v355 = vmax.f32 %v323, 0.0
      %v356 = vmax.f32 %v324, 0.0
      %v357 = vmax.f32 %v325, 0.0
      %v358 = vmax.f32 %v326, 0.0
      %v359 = vmax.f32 %v327, 0.0
      %v360 = vmax.f32 %v328, 0.0
      %v361 = vmax.f32 %v329, 0.0
      %v362 = vmax.f32 %v330, 0.0
      %v363 = vmax.f32 %v331, 0.0
      %v364 = vmax.f32 %v332, 0.0
      %v365 = vmax.f32 %v333, %v334
      %v366 = vmax.f32 %v335, %v336
      %v367 = vmax.f32 %v337, %v338
      %v368 = vmax.f32 %v339, %v340
      %v369 = vmax.f32 %v341, %v342
      %v370 = vmax.f32 %v343, %v344
      %v371 = vmax.f32 %v345, %v346
      %v372 = vmax.f32 %v347, %v348
      %v373 = vmax.f32 %v349, %v350
      %v374 = vmax.f32 %v351, %v352
      %v375 = vmax.f32 %v353, %v354
      %v376 = vmax.f32 %v355, %v356
      %v377 = vmax.f32 %v357, %v358
      %v378 = vmax.f32 %v359, %v360
      %v379 = vmax.f32 %v361, %v362
      %v380 = vmax.f32 %v363, %v364
      %v381 = vmax.f32 %v365, %v366
      %v382 = vmax.f32 %v367, %v368
      %v383 = vmax.f32 %v369, %v370
      %v384 = vmax.f32 %v371, %v372
      %v385 = vmax.f32 %v373, %v374
      %v386 = vmax.f32 %v375, %v376
      %v387 = vmax.f32 %v377, %v378
      %v388 = vmax.f32 %v379, %v380
      %389 = vst [vmem:[%s211] sm:$0xff] %v381
      %390 = vst [vmem:[%s211 + $0x8] sm:$0xff] %v382
      %391 = vst [vmem:[%s211 + $0x10] sm:$0xff] %v383
      %392 = vst [vmem:[%s211 + $0x18] sm:$0xff] %v384
      %393 = vst [vmem:[%s211 + $0x20] sm:$0xff] %v385
      %394 = vst [vmem:[%s211 + $0x28] sm:$0xff] %v386
      %395 = vst [vmem:[%s211 + $0x30] sm:$0xff] %v387
      %396 = vst [vmem:[%s211 + $0x38] sm:$0xff] %v388
      %s397 = smul.u32 8, %s19
      %p398 = scmp.lt.s32.totalorder %s18, 1
      %s399 = scalar_select %p398, %s18, 1
      %p400 = scmp.lt.s32.totalorder %s397, 7
      %s401 = scalar_select %p400, %s397, 7
      %s402 = smul.addr %s399, 8
      %s403 = sadd.s32 %s401, %s402
      %s404 = smul.addr %s403, 8
      %s405 = scalar_lea.vmem %s3, %s404
      // Predicated region
      $region33: #{conv_bn_layer.3} parent=31 // pred_check
        %p406 = pneg %p116
      $region34: #{conv_bn_layer.3} parent=31 // pred_check_branch
        %408 = sbr.rel (%p406) target = $region36
      $region35: #{conv_bn_layer.3} parent=31 // pred_region
        %s409 = smul.u32 8, %s19
      $region36: #{conv_bn_layer.3} parent=31 // pred_fallthru
        _
    $region32: #{conv_bn_layer.3} parent=5 // pred_fallthru
      _
    %p410 = scmp.le.s32.totalorder 2, %s9
    // Predicated region
    $region37: #{conv_bn_layer.3} parent=5 // pred_check
      %p411 = pneg %p410
    $region38: #{conv_bn_layer.3} parent=5 // pred_check_branch
      %413 = sbr.rel (%p411) target = $region40
    $region39: #{conv_bn_layer.3} parent=5 // pred_region
      %s414 = ssub.s32 %s9, 2
      // Predicated region
      $region41: #{conv_bn_layer.3} parent=39 // pred_check
        %p415 = pneg %p122
      $region42: #{conv_bn_layer.3} parent=39 // pred_check_branch
        %417 = sbr.rel (%p415) target = $region44
      $region43: #{conv_bn_layer.3} parent=39 // pred_region
        %s418 = smul.u32 8, %s21
        %p419 = scmp.lt.s32.totalorder %s20, 1
        %s420 = scalar_select %p419, %s20, 1
        %p421 = scmp.lt.s32.totalorder %s418, 7
        %s422 = scalar_select %p421, %s418, 7
        %s423 = smul.addr %s420, 8
        %s424 = sadd.s32 %s422, %s423
        %s425 = smul.addr %s424, 8
        %s426 = scalar_lea.vmem %s3, %s425
      $region44: #{conv_bn_layer.3} parent=39 // pred_fallthru
        _
    $region40: #{conv_bn_layer.3} parent=5 // pred_fallthru
      _
  $region6: #{conv_bn_layer.3} parent=0 // loop_footer
    %s13 = sadd.s32 1, %s9
  $region7: #{conv_bn_layer.3} parent=0 // loop_footer_branch
    %8 = sbr.rel target = $region3
  $region8: #{conv_bn_layer.3} parent=0 // loop_exit
    _

// kernel: conv_bn_layer.2
$region0: #{conv_bn_layer.2}
  #allocation0 [shape = 'u32[]', space=smem, size = 0x4, offset = 0x4, fixed_abs, tag = 'smem constant byte address 0x4 - core index']
  #allocation1 [shape = 'u32[144,128]{1,0:T(1,128)}', space=vmem, size = 0x12000, scoped, tag = 'internal scratch']
  %s0 = inlined_call_operand.vmem [shape: bf16[512,36], index: 0, kind: input, shape index: {}]
  %s1 = inlined_call_operand.vmem [shape: bf16[36,128], index: 1, kind: input, shape index: {}]
  %s2 = inlined_call_operand.vmem [shape: f32[512,128], index: 2, kind: output, shape index: {0}]
  %s3 = inlined_call_operand.vmem [shape: f32[2,2,128], index: 3, kind: output, shape index: {1}]
  %4 = xla_tuple %s2, %s3
  %s5 = sld [smem:[#allocation0]]
  $region49: #{conv_bn_layer.2} parent=0
    _
  %s7 = ssub.s32 1, %s5
  %s8 = scalar_select 0, %s7, %s5
  loop: start=0, step=1, limit=4
  $region2: #{conv_bn_layer.2} parent=0 // loop_pre_header
    _
  $region3: #{conv_bn_layer.2} parent=0 // loop_header
    %s10 = sphi 0, %s14
    %p11 = scmp.ge.s32.totalorder %s10, 4
    %s20 = sphi 0, %s22
    %s23 = sphi 0, %s20
    %s24 = sphi 0, %s23
    %s40 = sphi 0, %s24
    %s44 = sphi 0, %s44
    %s46 = sphi 0, %s44
    %s47 = sphi 0, %s46
    %s61 = sphi 0, %s47
    %s67 = sphi 0, %s69
    %s70 = sphi 0, %s67
    %s71 = sphi 0, %s70
    %s87 = sphi 0, %s71
    %s93 = sphi 0, %s95
    %s96 = sphi 0, %s93
    %s97 = sphi 0, %s96
    %s113 = sphi 0, %s97
  $region4: #{conv_bn_layer.2} parent=0 // loop_header_branch
    %13 = sbr.rel (%p11) target = $region8
  $region5: #{conv_bn_layer.2} parent=0 // loop_body
    %s15 = ssub.s32 %s10, 1
    %s16 = ssub.s32 %s10, 2
    %s17 = sadd.s32 %s10, 1
    %s18 = ssub.s32 %s10, %s17
    %p19 = scmp.eq.s32.totalorder %s18, 0
    %s21 = sadd.s32 %s20, 1
    %s22 = scalar_select %p19, %s20, %s21
    %p25 = pneg %p19
    %p26 = scmp.eq.s32.totalorder %s10, 1
    %p27 = por %p25, %p26
    %p28 = scmp.ne.s32.totalorder %s20, %s23
    %p29 = scmp.eq.s32.totalorder %s10, 0
    %p30 = por %p28, %p29
    %p31 = scmp.ne.s32.totalorder %s20, %s23
    %p32 = scmp.eq.s32.totalorder %s15, 1
    %p33 = por %p31, %p32
    %p34 = scmp.ne.s32.totalorder %s23, %s24
    %p35 = scmp.eq.s32.totalorder %s15, 0
    %p36 = por %p34, %p35
    %p37 = scmp.ne.s32.totalorder %s23, %s24
    %p38 = scmp.eq.s32.totalorder %s16, 1
    %p39 = por %p37, %p38
    %p41 = scmp.ne.s32.totalorder %s24, %s40
    %p42 = scmp.eq.s32.totalorder %s16, 0
    %p43 = por %p41, %p42
    %s45 = sadd.s32 %s44, 1
    %p48 = scmp.eq.s32.totalorder %s10, 1
    %p49 = scmp.ne.s32.totalorder %s44, %s46
    %p50 = scmp.eq.s32.totalorder %s10, 0
    %p51 = por %p49, %p50
    %p52 = scmp.ne.s32.totalorder %s44, %s46
    %p53 = scmp.eq.s32.totalorder %s15, 1
    %p54 = por %p52, %p53
    %p55 = scmp.ne.s32.totalorder %s46, %s47
    %p56 = scmp.eq.s32.totalorder %s15, 0
    %p57 = por %p55, %p56
    %p58 = scmp.ne.s32.totalorder %s46, %s47
    %p59 = scmp.eq.s32.totalorder %s16, 1
    %p60 = por %p58, %p59
    %p62 = scmp.ne.s32.totalorder %s47, %s61
    %p63 = scmp.eq.s32.totalorder %s16, 0
    %p64 = por %p62, %p63
    %s65 = ssub.s32 %s10, %s17
    %p66 = scmp.eq.s32.totalorder %s65, 0
    %s68 = sadd.s32 %s67, 1
    %s69 = scalar_select %p66, %s67, %s68
    %p72 = pneg %p66
    %p73 = scmp.eq.s32.totalorder %s10, 1
    %p74 = por %p72, %p73
    %p75 = scmp.ne.s32.totalorder %s67, %s70
    %p76 = scmp.eq.s32.totalorder %s10, 0
    %p77 = por %p75, %p76
    %p78 = scmp.ne.s32.totalorder %s67, %s70
    %p79 = scmp.eq.s32.totalorder %s15, 1
    %p80 = por %p78, %p79
    %p81 = scmp.ne.s32.totalorder %s70, %s71
    %p82 = scmp.eq.s32.totalorder %s15, 0
    %p83 = por %p81, %p82
    %p84 = scmp.ne.s32.totalorder %s70, %s71
    %p85 = scmp.eq.s32.totalorder %s16, 1
    %p86 = por %p84, %p85
    %p88 = scmp.ne.s32.totalorder %s71, %s87
    %p89 = scmp.eq.s32.totalorder %s16, 0
    %p90 = por %p88, %p89
    %s91 = ssub.s32 %s10, %s17
    %p92 = scmp.eq.s32.totalorder %s91, 0
    %s94 = sadd.s32 %s93, 1
    %s95 = scalar_select %p92, %s93, %s94
    %p98 = pneg %p92
    %p99 = scmp.eq.s32.totalorder %s10, 1
    %p100 = por %p98, %p99
    %p101 = scmp.ne.s32.totalorder %s93, %s96
    %p102 = scmp.eq.s32.totalorder %s10, 0
    %p103 = por %p101, %p102
    %p104 = scmp.ne.s32.totalorder %s93, %s96
    %p105 = scmp.eq.s32.totalorder %s15, 1
    %p106 = por %p104, %p105
    %p107 = scmp.ne.s32.totalorder %s96, %s97
    %p108 = scmp.eq.s32.totalorder %s15, 0
    %p109 = por %p107, %p108
    %p110 = scmp.ne.s32.totalorder %s96, %s97
    %p111 = scmp.eq.s32.totalorder %s16, 1
    %p112 = por %p110, %p111
    %p114 = scmp.ne.s32.totalorder %s97, %s113
    %p115 = scmp.eq.s32.totalorder %s16, 0
    %p116 = por %p114, %p115
    %p117 = scmp.le.s32.totalorder 1, %s10
    %p118 = scmp.lt.s32.totalorder %s10, 3
    %p119 = pnand %p117, %p118
    %p120 = pneg %p119
    // Predicated region
    $region9: #{conv_bn_layer.2} parent=5 // pred_check
      _
    $region10: #{conv_bn_layer.2} parent=5 // pred_check_branch
      %122 = sbr.rel (%p119) target = $region12
    $region11: #{conv_bn_layer.2} parent=5 // pred_region
      %s123 = ssub.s32 %s10, 1
      // Predicated region
      $region13: #{conv_bn_layer.2} parent=11 // pred_check
        %p124 = pneg %p57
      $region14: #{conv_bn_layer.2} parent=11 // pred_check_branch
        %126 = sbr.rel (%p124) target = $region16
      $region15: #{conv_bn_layer.2} parent=11 // pred_region
        _
      $region16: #{conv_bn_layer.2} parent=11 // pred_fallthru
        _
    $region12: #{conv_bn_layer.2} parent=5 // pred_fallthru
      _
    %p127 = scmp.lt.s32.totalorder %s10, 2
    // Predicated region
    $region17: #{conv_bn_layer.2} parent=5 // pred_check
      %p128 = pneg %p127
    $region18: #{conv_bn_layer.2} parent=5 // pred_check_branch
      %130 = sbr.rel (%p128) target = $region20
    $region19: #{conv_bn_layer.2} parent=5 // pred_region
      // Predicated region
      $region21: #{conv_bn_layer.2} parent=19 // pred_check
        %p131 = pneg %p30
      $region22: #{conv_bn_layer.2} parent=19 // pred_check_branch
        %133 = sbr.rel (%p131) target = $region24
      $region23: #{conv_bn_layer.2} parent=19 // pred_region
        %s134 = smul.u32 32, %s10
        %p135 = scmp.lt.s32.totalorder %s134, 63
        %s136 = scalar_select %p135, %s134, 63
        %s137 = smul.addr %s136, 4
        %s138 = scalar_lea.vmem %s0, %s137
        %s139 = smul.u32 32, %s10
      $region24: #{conv_bn_layer.2} parent=19 // pred_fallthru
        _
    $region20: #{conv_bn_layer.2} parent=5 // pred_fallthru
      _
    %p140 = scmp.le.s32.totalorder 1, %s10
    %p141 = scmp.lt.s32.totalorder %s10, 3
    %p142 = pnand %p140, %p141
    %p143 = pneg %p142
    // Predicated region
    $region25: #{conv_bn_layer.2} parent=5 // pred_check
      _
    $region26: #{conv_bn_layer.2} parent=5 // pred_check_branch
      %145 = sbr.rel (%p142) target = $region28
    $region27: #{conv_bn_layer.2} parent=5 // pred_region
      %s146 = ssub.s32 %s10, 1
      %s147 = smul.u32 32, %s15
      %p148 = scmp.lt.s32.totalorder %s147, 63
      %s149 = scalar_select %p148, %s147, 63
      %s150 = smul.addr %s149, 4
      %s151 = scalar_lea.vmem %s0, %s150
      %p152 = pneg %p36
      %p153 = pneg %p33
      %p154 = pneg %p57
      %p155 = pneg %p54
      %p156 = pneg %p83
      %p157 = pneg %p80
      %s158 = smul.u32 32, %s15
      %p159 = scmp.lt.s32.totalorder %s158, 63
      %s160 = scalar_select %p159, %s158, 63
      %s161 = smul.addr %s160, 8
      %s162 = scalar_lea.vmem %s2, %s161
      %p163 = pneg %p109
      %p164 = pneg %p106
      %p165 = scmp.lt.s32.totalorder %s15, 1
      %s166 = scalar_select %p165, %s15, 1
      %s167 = smul.addr %s166, 2
      %s168 = scalar_lea.vmem %s3, %s167
      %s169 = smul.u32 32, %s15
      %p170 = scmp.lt.s32.totalorder %s169, 63
      %s171 = scalar_select %p170, %s169, 63
      %s172 = smul.addr %s171, 4
      %s173 = scalar_lea.vmem %s0, %s172
      %s174 = smul.u32 32, %s15
      %s175 = smul.u32 32, %s15
      %p176 = scmp.lt.s32.totalorder %s175, 63
      %s177 = scalar_select %p176, %s175, 63
      %s178 = smul.addr %s177, 8
      %s179 = scalar_lea.vmem %s2, %s178
      %s180 = smul.u32 32, %s15
      %p181 = scmp.lt.s32.totalorder %s15, 1
      %s182 = scalar_select %p181, %s15, 1
      %s183 = smul.addr %s182, 2
      %s184 = scalar_lea.vmem %s3, %s183
      %v186 = vld [vmem:[%s173] sm:$0xf]
      %v187 = vld [vmem:[%s173 + $0x4] sm:$0xf]
      %v188 = vld [vmem:[%s173 + $0x8] sm:$0xf]
      %v189 = vld [vmem:[%s173 + $0xc] sm:$0xf]
      %v190 = vld [vmem:[%s173 + $0x10] sm:$0xf]
      %v191 = vld [vmem:[%s173 + $0x14] sm:$0xf]
      %v192 = vld [vmem:[%s173 + $0x18] sm:$0xf]
      %v193 = vld [vmem:[%s173 + $0x1c] sm:$0xf]
      %v194 = vld [vmem:[%s173 + $0x20] sm:$0xf]
      %v195 = vld [vmem:[%s173 + $0x24] sm:$0xf]
      %v196 = vld [vmem:[%s173 + $0x28] sm:$0xf]
      %v197 = vld [vmem:[%s173 + $0x2c] sm:$0xf]
      %v198 = vld [vmem:[%s173 + $0x30] sm:$0xf]
      %v199 = vld [vmem:[%s173 + $0x34] sm:$0xf]
      %v200 = vld [vmem:[%s173 + $0x38] sm:$0xf]
      %v201 = vld [vmem:[%s173 + $0x3c] sm:$0xf]
      %v202 = vld [vmem:[%s173 + $0x40] sm:$0xf]
      %v203 = vld [vmem:[%s173 + $0x44] sm:$0xf]
      %v204 = vld [vmem:[%s173 + $0x48] sm:$0xf]
      %v205 = vld [vmem:[%s173 + $0x4c] sm:$0xf]
      %v206 = vld [vmem:[%s173 + $0x50] sm:$0xf]
      %v207 = vld [vmem:[%s173 + $0x54] sm:$0xf]
      %v208 = vld [vmem:[%s173 + $0x58] sm:$0xf]
      %v209 = vld [vmem:[%s173 + $0x5c] sm:$0xf]
      %v210 = vld [vmem:[%s173 + $0x60] sm:$0xf]
      %v211 = vld [vmem:[%s173 + $0x64] sm:$0xf]
      %v212 = vld [vmem:[%s173 + $0x68] sm:$0xf]
      %v213 = vld [vmem:[%s173 + $0x6c] sm:$0xf]
      %v214 = vld [vmem:[%s173 + $0x70] sm:$0xf]
      %v215 = vld [vmem:[%s173 + $0x74] sm:$0xf]
      %v216 = vld [vmem:[%s173 + $0x78] sm:$0xf]
      %v217 = vld [vmem:[%s173 + $0x7c] sm:$0xf]
      %v218 = vld [vmem:[%s1] sm:$0xf]
      %v219 = vld [vmem:[%s1 + $0x4] sm:$0xf]
      %v220 = vld [vmem:[%s1 + $0x8] sm:$0xf]
      %v221 = vld [vmem:[%s1 + $0xc] sm:$0xf]
      %v222 = vld [vmem:[%s1 + $0x10] sm:$0x3]
      %v255 = vunpack.c.l.b16 %v186
      %v256 = vunpack.c.l.b16 %v187
      %v257 = vunpack.c.l.b16 %v188
      %v258 = vunpack.c.l.b16 %v189
      %v259 = vunpack.c.l.b16 %v190
      %v260 = vunpack.c.l.b16 %v191
      %v261 = vunpack.c.l.b16 %v192
      %v262 = vunpack.c.l.b16 %v193
      %v263 = vunpack.c.l.b16 %v194
      %v264 = vunpack.c.l.b16 %v195
      %v265 = vunpack.c.l.b16 %v196
      %v266 = vunpack.c.l.b16 %v197
      %v267 = vunpack.c.l.b16 %v198
      %v268 = vunpack.c.l.b16 %v199
      %v269 = vunpack.c.l.b16 %v200
      %v270 = vunpack.c.l.b16 %v201
      %v271 = vunpack.c.l.b16 %v202
      %v272 = vunpack.c.l.b16 %v203
      %v273 = vunpack.c.l.b16 %v204
      %v274 = vunpack.c.l.b16 %v205
      %v275 = vunpack.c.l.b16 %v206
      %v276 = vunpack.c.l.b16 %v207
      %v277 = vunpack.c.l.b16 %v208
      %v278 = vunpack.c.l.b16 %v209
      %v279 = vunpack.c.l.b16 %v210
      %v280 = vunpack.c.l.b16 %v211
      %v281 = vunpack.c.l.b16 %v212
      %v282 = vunpack.c.l.b16 %v213
      %v283 = vunpack.c.l.b16 %v214
      %v284 = vunpack.c.l.b16 %v215
      %v285 = vunpack.c.l.b16 %v216
      %v286 = vunpack.c.l.b16 %v217
      %v287 = vpack.c.b16 %v256, %v255
      %v288 = vpack.c.b16 %v258, %v257
      %v289 = vpack.c.b16 %v260, %v259
      %v290 = vpack.c.b16 %v262, %v261
      %v291 = vpack.c.b16 %v264, %v263
      %v292 = vpack.c.b16 %v266, %v265
      %v293 = vpack.c.b16 %v268, %v267
      %v294 = vpack.c.b16 %v270, %v269
      %v295 = vpack.c.b16 %v272, %v271
      %v296 = vpack.c.b16 %v274, %v273
      %v297 = vpack.c.b16 %v276, %v275
      %v298 = vpack.c.b16 %v278, %v277
      %v299 = vpack.c.b16 %v280, %v279
      %v300 = vpack.c.b16 %v282, %v281
      %v301 = vpack.c.b16 %v284, %v283
      %v302 = vpack.c.b16 %v286, %v285
      %v308 = vunpack.c.l.b16 %v218
      %v309 = vunpack.c.l.b16 %v219
      %v310 = vunpack.c.l.b16 %v220
      %v311 = vunpack.c.l.b16 %v221
      %v312 = vunpack.c.l.b16 %v222
      %v313 = vpack.c.b16 %v309, %v308
      %v314 = vpack.c.b16 %v311, %v310
      %v315 = vpack.c.b16 %v312, %v312
      %vm318 = vcmask 293888
      %v320 = vsel %vm318, %v287, 0
      %v323 = vsel %vm318, %v288, 0
      %v326 = vsel %vm318, %v289, 0
      %v329 = vsel %vm318, %v290, 0
      %v332 = vsel %vm318, %v291, 0
      %v335 = vsel %vm318, %v292, 0
      %v338 = vsel %vm318, %v293, 0
      %v341 = vsel %vm318, %v294, 0
      %v344 = vsel %vm318, %v295, 0
      %v347 = vsel %vm318, %v296, 0
      %v350 = vsel %vm318, %v297, 0
      %v353 = vsel %vm318, %v298, 0
      %v356 = vsel %vm318, %v299, 0
      %v359 = vsel %vm318, %v300, 0
      %v362 = vsel %vm318, %v301, 0
      %v365 = vsel %vm318, %v302, 0
      %vm367 = vcmask 1041408
      %v369 = vsel %vm367, %v315, 0
      %371 = vmatprep.subr.bf16.mxu0 0
      %372 = vmatpush1.bf16.msra.mxu0 %v313
      %373 = vmatprep.subr.bf16.mxu0 0
      %374 = vmatpush1.bf16.msra.mxu0 %v314
      %375 = vmatprep.subr.bf16.mxu0 0
      %376 = vmatpush1.bf16.msra.mxu0 %v369
      %377 = vmatprep.subr.bf16.mxu0 0
      %378 = vmatpush1.bf16.msra.mxu0 0
      %379 = vmatprep.subr.bf16.mxu0 0
      %380 = vmatpush1.bf16.msra.mxu0 0
      %381 = vmatprep.subr.bf16.mxu0 0
      %382 = vmatpush1.bf16.msra.mxu0 0
      %383 = vmatprep.subr.bf16.mxu0 0
      %384 = vmatpush1.bf16.msra.mxu0 0
      %385 = vmatprep.subr.bf16.mxu0 0
      %386 = vmatpush1.bf16.msra.mxu0 0
      %387 = vmatprep.subr.bf16.mxu0 0
      %388 = vmatpush1.bf16.msra.mxu0 0
      %389 = vmatprep.subr.bf16.mxu0 0
      %390 = vmatpush1.bf16.msra.mxu0 0
      %391 = vmatprep.subr.bf16.mxu0 0
      %392 = vmatpush1.bf16.msra.mxu0 0
      %393 = vmatprep.subr.bf16.mxu0 0
      %394 = vmatpush1.bf16.msra.mxu0 0
      %395 = vmatprep.subr.bf16.mxu0 0
      %396 = vmatpush1.bf16.msra.mxu0 0
      %397 = vmatprep.subr.bf16.mxu0 0
      %398 = vmatpush1.bf16.msra.mxu0 0
      %399 = vmatprep.subr.bf16.mxu0 0
      %400 = vmatpush1.bf16.msra.mxu0 0
      %401 = vmatprep.subr.bf16.mxu0 0
      %402 = vmatpush1.bf16.msra.mxu0 0
      %403 = vmatprep.mubr.bf16.mxu0 0
      %404 = vmatmul.mubr.bf16.gmra.mrb[0].mxu0 %v320
      %v405 = vpop.f32.mrb[0].mxu0
      %v406 = vadd.f32 0.0, %v405
      %v407 = vpop.f32.mrb[0].mxu0
      %v408 = vpop.f32.mrb[0].mxu0
      %v409 = vadd.f32 0.0, %v408
      %v410 = vpop.f32.mrb[0].mxu0
      %411 = vmatprep.mubr.bf16.mxu0 0
      %412 = vmatmul.mubr.bf16.gmra.mrb[0].mxu0 %v323
      %v413 = vpop.f32.mrb[0].mxu0
      %v414 = vadd.f32 0.0, %v413
      %v415 = vpop.f32.mrb[0].mxu0
      %v416 = vpop.f32.mrb[0].mxu0
      %v417 = vadd.f32 0.0, %v416
      %v418 = vpop.f32.mrb[0].mxu0
      %419 = vmatprep.mubr.bf16.mxu0 0
      %420 = vmatmul.mubr.bf16.gmra.mrb[0].mxu0 %v326
      %v421 = vpop.f32.mrb[0].mxu0
      %v422 = vadd.f32 0.0, %v421
      %v423 = vpop.f32.mrb[0].mxu0
      %v424 = vpop.f32.mrb[0].mxu0
      %v425 = vadd.f32 0.0, %v424
      %v426 = vpop.f32.mrb[0].mxu0
      %427 = vmatprep.mubr.bf16.mxu0 0
      %428 = vmatmul.mubr.bf16.gmra.mrb[0].mxu0 %v329
      %v429 = vpop.f32.mrb[0].mxu0
      %v430 = vadd.f32 0.0, %v429
      %v431 = vpop.f32.mrb[0].mxu0
      %v432 = vpop.f32.mrb[0].mxu0
      %v433 = vadd.f32 0.0, %v432
      %v434 = vpop.f32.mrb[0].mxu0
      %435 = vmatprep.mubr.bf16.mxu0 0
      %436 = vmatmul.mubr.bf16.gmra.mrb[0].mxu0 %v332
      %v437 = vpop.f32.mrb[0].mxu0
      %v438 = vadd.f32 0.0, %v437
      %v439 = vpop.f32.mrb[0].mxu0
      %v440 = vpop.f32.mrb[0].mxu0
      %v441 = vadd.f32 0.0, %v440
      %v442 = vpop.f32.mrb[0].mxu0
      %443 = vmatprep.mubr.bf16.mxu0 0
      %444 = vmatmul.mubr.bf16.gmra.mrb[0].mxu0 %v335
      %v445 = vpop.f32.mrb[0].mxu0
      %v446 = vadd.f32 0.0, %v445
      %v447 = vpop.f32.mrb[0].mxu0
      %v448 = vpop.f32.mrb[0].mxu0
      %v449 = vadd.f32 0.0, %v448
      %v450 = vpop.f32.mrb[0].mxu0
      %451 = vmatprep.mubr.bf16.mxu0 0
      %452 = vmatmul.mubr.bf16.gmra.mrb[0].mxu0 %v338
      %v453 = vpop.f32.mrb[0].mxu0
      %v454 = vadd.f32 0.0, %v453
      %v455 = vpop.f32.mrb[0].mxu0
      %v456 = vpop.f32.mrb[0].mxu0
      %v457 = vadd.f32 0.0, %v456
      %v458 = vpop.f32.mrb[0].mxu0
      %459 = vmatprep.mubr.bf16.mxu0 0
      %460 = vmatmul.mubr.bf16.gmra.mrb[0].mxu0 %v341
      %v461 = vpop.f32.mrb[0].mxu0
      %v462 = vadd.f32 0.0, %v461
      %v463 = vpop.f32.mrb[0].mxu0
      %v464 = vpop.f32.mrb[0].mxu0
      %v465 = vadd.f32 0.0, %v464
      %v466 = vpop.f32.mrb[0].mxu0
      %467 = vmatprep.mubr.bf16.mxu0 0
      %468 = vmatmul.mubr.bf16.gmra.mrb[0].mxu0 %v344
      %v469 = vpop.f32.mrb[0].mxu0
      %v470 = vadd.f32 0.0, %v469
      %v471 = vpop.f32.mrb[0].mxu0
      %v472 = vpop.f32.mrb[0].mxu0
      %v473 = vadd.f32 0.0, %v472
      %v474 = vpop.f32.mrb[0].mxu0
      %475 = vmatprep.mubr.bf16.mxu0 0
      %476 = vmatmul.mubr.bf16.gmra.mrb[0].mxu0 %v347
      %v477 = vpop.f32.mrb[0].mxu0
      %v478 = vadd.f32 0.0, %v477
      %v479 = vpop.f32.mrb[0].mxu0
      %v480 = vpop.f32.mrb[0].mxu0
      %v481 = vadd.f32 0.0, %v480
      %v482 = vpop.f32.mrb[0].mxu0
      %483 = vmatprep.mubr.bf16.mxu0 0
      %484 = vmatmul.mubr.bf16.gmra.mrb[0].mxu0 %v350
      %v485 = vpop.f32.mrb[0].mxu0
      %v486 = vadd.f32 0.0, %v485
      %v487 = vpop.f32.mrb[0].mxu0
      %v488 = vpop.f32.mrb[0].mxu0
      %v489 = vadd.f32 0.0, %v488
      %v490 = vpop.f32.mrb[0].mxu0
      %491 = vmatprep.mubr.bf16.mxu0 0
      %492 = vmatmul.mubr.bf16.gmra.mrb[0].mxu0 %v353
      %v493 = vpop.f32.mrb[0].mxu0
      %v494 = vadd.f32 0.0, %v493
      %v495 = vpop.f32.mrb[0].mxu0
      %v496 = vpop.f32.mrb[0].mxu0
      %v497 = vadd.f32 0.0, %v496
      %v498 = vpop.f32.mrb[0].mxu0
      %499 = vmatprep.mubr.bf16.mxu0 0
      %500 = vmatmul.mubr.bf16.gmra.mrb[0].mxu0 %v356
      %v501 = vpop.f32.mrb[0].mxu0
      %v502 = vadd.f32 0.0, %v501
      %v503 = vpop.f32.mrb[0].mxu0
      %v504 = vpop.f32.mrb[0].mxu0
      %v505 = vadd.f32 0.0, %v504
      %v506 = vpop.f32.mrb[0].mxu0
      %507 = vmatprep.mubr.bf16.mxu0 0
      %508 = vmatmul.mubr.bf16.gmra.mrb[0].mxu0 %v359
      %v509 = vpop.f32.mrb[0].mxu0
      %v510 = vadd.f32 0.0, %v509
      %v511 = vpop.f32.mrb[0].mxu0
      %v512 = vpop.f32.mrb[0].mxu0
      %v513 = vadd.f32 0.0, %v512
      %v514 = vpop.f32.mrb[0].mxu0
      %515 = vmatprep.mubr.bf16.mxu0 0
      %516 = vmatmul.mubr.bf16.gmra.mrb[0].mxu0 %v362
      %v517 = vpop.f32.mrb[0].mxu0
      %v518 = vadd.f32 0.0, %v517
      %v519 = vpop.f32.mrb[0].mxu0
      %v520 = vpop.f32.mrb[0].mxu0
      %v521 = vadd.f32 0.0, %v520
      %v522 = vpop.f32.mrb[0].mxu0
      %523 = vmatprep.mubr.bf16.mxu0 0
      %524 = vmatmul.mubr.bf16.gmra.mrb[0].mxu0 %v365
      %v525 = vpop.f32.mrb[0].mxu0
      %v526 = vadd.f32 0.0, %v525
      %v527 = vpop.f32.mrb[0].mxu0
      %v528 = vpop.f32.mrb[0].mxu0
      %v529 = vadd.f32 0.0, %v528
      %v530 = vpop.f32.mrb[0].mxu0
      %531 = vdwg.mxu0
      %532 = vst [vmem:[%s179] sm:$0xff] %v406
      %533 = vst [vmem:[%s179 + $0x8] sm:$0xff] %v409
      %534 = vst [vmem:[%s179 + $0x10] sm:$0xff] %v414
      %535 = vst [vmem:[%s179 + $0x18] sm:$0xff] %v417
      %536 = vst [vmem:[%s179 + $0x20] sm:$0xff] %v422
      %537 = vst [vmem:[%s179 + $0x28] sm:$0xff] %v425
      %538 = vst [vmem:[%s179 + $0x30] sm:$0xff] %v430
      %539 = vst [vmem:[%s179 + $0x38] sm:$0xff] %v433
      %540 = vst [vmem:[%s179 + $0x40] sm:$0xff] %v438
      %541 = vst [vmem:[%s179 + $0x48] sm:$0xff] %v441
      %542 = vst [vmem:[%s179 + $0x50] sm:$0xff] %v446
      %543 = vst [vmem:[%s179 + $0x58] sm:$0xff] %v449
      %544 = vst [vmem:[%s179 + $0x60] sm:$0xff] %v454
      %545 = vst [vmem:[%s179 + $0x68] sm:$0xff] %v457
      %546 = vst [vmem:[%s179 + $0x70] sm:$0xff] %v462
      %547 = vst [vmem:[%s179 + $0x78] sm:$0xff] %v465
      %548 = vst [vmem:[%s179 + $0x80] sm:$0xff] %v470
      %549 = vst [vmem:[%s179 + $0x88] sm:$0xff] %v473
      %550 = vst [vmem:[%s179 + $0x90] sm:$0xff] %v478
      %551 = vst [vmem:[%s179 + $0x98] sm:$0xff] %v481
      %552 = vst [vmem:[%s179 + $0xa0] sm:$0xff] %v486
      %553 = vst [vmem:[%s179 + $0xa8] sm:$0xff] %v489
      %554 = vst [vmem:[%s179 + $0xb0] sm:$0xff] %v494
      %555 = vst [vmem:[%s179 + $0xb8] sm:$0xff] %v497
      %556 = vst [vmem:[%s179 + $0xc0] sm:$0xff] %v502
      %557 = vst [vmem:[%s179 + $0xc8] sm:$0xff] %v505
      %558 = vst [vmem:[%s179 + $0xd0] sm:$0xff] %v510
      %559 = vst [vmem:[%s179 + $0xd8] sm:$0xff] %v513
      %560 = vst [vmem:[%s179 + $0xe0] sm:$0xff] %v518
      %561 = vst [vmem:[%s179 + $0xe8] sm:$0xff] %v521
      %562 = vst [vmem:[%s179 + $0xf0] sm:$0xff] %v526
      %563 = vst [vmem:[%s179 + $0xf8] sm:$0xff] %v529
      %v564 = vadd.f32 %v406, %v409
      %v565 = vadd.f32 %v564, %v414
      %v566 = vadd.f32 %v565, %v417
      %v567 = vadd.f32 %v566, %v422
      %v568 = vadd.f32 %v567, %v425
      %v569 = vadd.f32 %v568, %v430
      %v570 = vadd.f32 %v569, %v433
      %v571 = vadd.f32 %v570, %v438
      %v572 = vadd.f32 %v571, %v441
      %v573 = vadd.f32 %v572, %v446
      %v574 = vadd.f32 %v573, %v449
      %v575 = vadd.f32 %v574, %v454
      %v576 = vadd.f32 %v575, %v457
      %v577 = vadd.f32 %v576, %v462
      %v578 = vadd.f32 %v577, %v465
      %v579 = vadd.f32 %v578, %v470
      %v580 = vadd.f32 %v579, %v473
      %v581 = vadd.f32 %v580, %v478
      %v582 = vadd.f32 %v581, %v481
      %v583 = vadd.f32 %v582, %v486
      %v584 = vadd.f32 %v583, %v489
      %v585 = vadd.f32 %v584, %v494
      %v586 = vadd.f32 %v585, %v497
      %v587 = vadd.f32 %v586, %v502
      %v588 = vadd.f32 %v587, %v505
      %v589 = vadd.f32 %v588, %v510
      %v590 = vadd.f32 %v589, %v513
      %v591 = vadd.f32 %v590, %v518
      %v592 = vadd.f32 %v591, %v521
      %v593 = vadd.f32 %v592, %v526
      %v594 = vadd.f32 %v593, %v529
      %v595 = vrot.slane %v594, 4
      %v596 = vadd.f32 %v594, %v595
      %v597 = vrot.slane %v596, 2
      %v598 = vadd.f32 %v596, %v597
      %v599 = vrot.slane %v598, 1
      %v600 = vadd.f32 %v598, %v599
      %v601 = vmul.f32 %v406, %v406
      %v602 = vmul.f32 %v409, %v409
      %v603 = vmul.f32 %v414, %v414
      %v604 = vmul.f32 %v417, %v417
      %v605 = vmul.f32 %v422, %v422
      %v606 = vmul.f32 %v425, %v425
      %v607 = vmul.f32 %v430, %v430
      %v608 = vmul.f32 %v433, %v433
      %v609 = vmul.f32 %v438, %v438
      %v610 = vmul.f32 %v441, %v441
      %v611 = vmul.f32 %v446, %v446
      %v612 = vmul.f32 %v449, %v449
      %v613 = vmul.f32 %v454, %v454
      %v614 = vmul.f32 %v457, %v457
      %v615 = vmul.f32 %v462, %v462
      %v616 = vmul.f32 %v465, %v465
      %v617 = vmul.f32 %v470, %v470
      %v618 = vmul.f32 %v473, %v473
      %v619 = vmul.f32 %v478, %v478
      %v620 = vmul.f32 %v481, %v481
      %v621 = vmul.f32 %v486, %v486
      %v622 = vmul.f32 %v489, %v489
      %v623 = vmul.f32 %v494, %v494
      %v624 = vmul.f32 %v497, %v497
      %v625 = vmul.f32 %v502, %v502
      %v626 = vmul.f32 %v505, %v505
      %v627 = vmul.f32 %v510, %v510
      %v628 = vmul.f32 %v513, %v513
      %v629 = vmul.f32 %v518, %v518
      %v630 = vmul.f32 %v521, %v521
      %v631 = vmul.f32 %v526, %v526
      %v632 = vmul.f32 %v529, %v529
      %v633 = vadd.f32 %v601, %v602
      %v634 = vadd.f32 %v633, %v603
      %v635 = vadd.f32 %v634, %v604
      %v636 = vadd.f32 %v635, %v605
      %v637 = vadd.f32 %v636, %v606
      %v638 = vadd.f32 %v637, %v607
      %v639 = vadd.f32 %v638, %v608
      %v640 = vadd.f32 %v639, %v609
      %v641 = vadd.f32 %v640, %v610
      %v642 = vadd.f32 %v641, %v611
      %v643 = vadd.f32 %v642, %v612
      %v644 = vadd.f32 %v643, %v613
      %v645 = vadd.f32 %v644, %v614
      %v646 = vadd.f32 %v645, %v615
      %v647 = vadd.f32 %v646, %v616
      %v648 = vadd.f32 %v647, %v617
      %v649 = vadd.f32 %v648, %v618
      %v650 = vadd.f32 %v649, %v619
      %v651 = vadd.f32 %v650, %v620
      %v652 = vadd.f32 %v651, %v621
      %v653 = vadd.f32 %v652, %v622
      %v654 = vadd.f32 %v653, %v623
      %v655 = vadd.f32 %v654, %v624
      %v656 = vadd.f32 %v655, %v625
      %v657 = vadd.f32 %v656, %v626
      %v658 = vadd.f32 %v657, %v627
      %v659 = vadd.f32 %v658, %v628
      %v660 = vadd.f32 %v659, %v629
      %v661 = vadd.f32 %v660, %v630
      %v662 = vadd.f32 %v661, %v631
      %v663 = vadd.f32 %v662, %v632
      %v664 = vrot.slane %v663, 4
      %v665 = vadd.f32 %v663, %v664
      %v666 = vrot.slane %v665, 2
      %v667 = vadd.f32 %v665, %v666
      %v668 = vrot.slane %v667, 1
      %v669 = vadd.f32 %v667, %v668
      %vm670 = vcmask 1040384
      %v671 = vsel %vm670, %v600, %v669
      %672 = vst [vmem:[%s184] sm:$0x3] %v671
      %s673 = smul.u32 32, %s15
      %p674 = scmp.lt.s32.totalorder %s673, 63
      %s675 = scalar_select %p674, %s673, 63
      %s676 = smul.addr %s675, 8
      %s677 = scalar_lea.vmem %s2, %s676
      %p678 = scmp.lt.s32.totalorder %s15, 1
      %s679 = scalar_select %p678, %s15, 1
      %s680 = smul.addr %s679, 2
      %s681 = scalar_lea.vmem %s3, %s680
      // Predicated region
      $region29: #{conv_bn_layer.2} parent=27 // pred_check
        %p682 = pneg %p80
      $region30: #{conv_bn_layer.2} parent=27 // pred_check_branch
        %684 = sbr.rel (%p682) target = $region32
      $region31: #{conv_bn_layer.2} parent=27 // pred_region
        %s685 = smul.u32 32, %s15
      $region32: #{conv_bn_layer.2} parent=27 // pred_fallthru
        _
      // Predicated region
      $region33: #{conv_bn_layer.2} parent=27 // pred_check
        %p686 = pneg %p106
      $region34: #{conv_bn_layer.2} parent=27 // pred_check_branch
        %688 = sbr.rel (%p686) target = $region36
      $region35: #{conv_bn_layer.2} parent=27 // pred_region
        _
      $region36: #{conv_bn_layer.2} parent=27 // pred_fallthru
        _
    $region28: #{conv_bn_layer.2} parent=5 // pred_fallthru
      _
    %p689 = scmp.le.s32.totalorder 2, %s10
    // Predicated region
    $region37: #{conv_bn_layer.2} parent=5 // pred_check
      %p690 = pneg %p689
    $region38: #{conv_bn_layer.2} parent=5 // pred_check_branch
      %692 = sbr.rel (%p690) target = $region40
    $region39: #{conv_bn_layer.2} parent=5 // pred_region
      %s693 = ssub.s32 %s10, 2
      // Predicated region
      $region41: #{conv_bn_layer.2} parent=39 // pred_check
        %p694 = pneg %p86
      $region42: #{conv_bn_layer.2} parent=39 // pred_check_branch
        %696 = sbr.rel (%p694) target = $region44
      $region43: #{conv_bn_layer.2} parent=39 // pred_region
        %s697 = smul.u32 32, %s16
        %p698 = scmp.lt.s32.totalorder %s697, 63
        %s699 = scalar_select %p698, %s697, 63
        %s700 = smul.addr %s699, 8
        %s701 = scalar_lea.vmem %s2, %s700
      $region44: #{conv_bn_layer.2} parent=39 // pred_fallthru
        _
      // Predicated region
      $region45: #{conv_bn_layer.2} parent=39 // pred_check
        %p702 = pneg %p112
      $region46: #{conv_bn_layer.2} parent=39 // pred_check_branch
        %704 = sbr.rel (%p702) target = $region48
      $region47: #{conv_bn_layer.2} parent=39 // pred_region
        %p705 = scmp.lt.s32.totalorder %s16, 1
        %s706 = scalar_select %p705, %s16, 1
        %s707 = smul.addr %s706, 2
        %s708 = scalar_lea.vmem %s3, %s707
      $region48: #{conv_bn_layer.2} parent=39 // pred_fallthru
        _
    $region40: #{conv_bn_layer.2} parent=5 // pred_fallthru
      _
  $region6: #{conv_bn_layer.2} parent=0 // loop_footer
    %s14 = sadd.s32 1, %s10
  $region7: #{conv_bn_layer.2} parent=0 // loop_footer_branch
    %9 = sbr.rel target = $region3
  $region8: #{conv_bn_layer.2} parent=0 // loop_exit
    _

</llo_original>
